<compile_context>
chip_gen: v7x
topology: tpu7x:2x2x1
jax: 0.10.0
libtpu: 0.0.40
codegen_flags: <defaults>
</compile_context>

<pallas_src>
import functools

import jax
import jax.numpy as jnp
from jax.experimental import pallas as pl
from jax.experimental.pallas import tpu as pltpu

IN_F, H1, H2, OUT_F = 12, 64, 32, 2
NEG_SLOPE = 0.01  # torch.nn.LeakyReLU default


def _leaky_relu(x):
    return jnp.where(x >= 0, x, NEG_SLOPE * x)


def _round_up(n, m):
    return ((n + m - 1) // m) * m


def actor_kernel(xt_ref, w1t_ref, b1_ref, w2t_ref, b2_ref, w3d_ref, b3d_ref, o_ref):
    # Feature-major layout: batch is the lane axis -> every vreg is lane-dense.
    xt = xt_ref[...]                                                     # (12, bb)

    h1 = jnp.dot(w1t_ref[...], xt, preferred_element_type=jnp.float32)  # (64, bb)
    h1 = _leaky_relu(h1 + b1_ref[...])

    h2 = jnp.dot(w2t_ref[...], h1, preferred_element_type=jnp.float32)  # (32, bb)
    h2 = _leaky_relu(h2 + b2_ref[...])

    # 2-class softmax == sigmoid of the logit difference (exact identity):
    #   p1 = exp(l1)/(exp(l0)+exp(l1)) = 1/(1+exp(-(l1-l0))),  p0 = 1 - p1
    d = jnp.dot(w3d_ref[...], h2, preferred_element_type=jnp.float32)   # (1, bb)
    d = d + b3d_ref[...]
    p1 = pl.reciprocal(1.0 + jnp.exp(-d), approx=False)
    p0 = 1.0 - p1

    # Lane-dense stores (last dim = bb, a multiple of 128).
    o_ref[0:1, :] = p0.astype(o_ref.dtype)
    o_ref[1:2, :] = p1.astype(o_ref.dtype)


@functools.partial(jax.jit, static_argnames=("block_b",))
def actor_forward(x, params, block_b=512):
    w1, b1, w2, b2, w3, b3 = params
    B = x.shape[0]
    assert block_b % 128 == 0, "block_b must be a multiple of 128 (lane width)"

    # Pick the batch tile: big (amortizes ~0.35us/step grid overhead) but never
    # larger than the (128-rounded) batch; pad B so no divisibility is required.
    bb = min(block_b, _round_up(B, 128))
    B_pad = _round_up(B, bb)
    grid = (B_pad // bb,)

    # Layout plumbing done once in the wrapper (tiny arrays / one pass over x).
    x_t = x.astype(jnp.float32).T                                   # (12, B)
    if B_pad != B:
        x_t = jnp.pad(x_t, ((0, 0), (0, B_pad - B)))

    w1_t = w1.T                                                     # (64, 12)
    w2_t = w2.T                                                     # (32, 64)
    b1_c = b1.reshape(H1, 1)
    b2_c = b2.reshape(H2, 1)
    w3_d = (w3[:, 1] - w3[:, 0]).reshape(1, H2)                     # (1, 32)
    b3_f = b3.reshape(-1)
    b3_d = (b3_f[1] - b3_f[0]).reshape(1, 1)                        # (1, 1)

    full = lambda shape: pl.BlockSpec(shape, lambda i: (0, 0))

    cost = pl.CostEstimate(
        flops=2 * B_pad * (IN_F * H1 + H1 * H2 + H2 * OUT_F),
        transcendentals=B_pad,  # one exp (sigmoid) per row
        bytes_accessed=4 * (B_pad * (IN_F + OUT_F)
                            + IN_F * H1 + H1 + H1 * H2 + H2 + H2 * OUT_F + OUT_F),
    )

    out_t = pl.pallas_call(
        actor_kernel,
        out_shape=jax.ShapeDtypeStruct((OUT_F, B_pad), jnp.float32),
        grid_spec=pltpu.PrefetchScalarGridSpec(
            num_scalar_prefetch=0,
            grid=grid,
            in_specs=[
                pl.BlockSpec((IN_F, bb), lambda i: (0, i)),   # x (feature-major)
                full((H1, IN_F)), full((H1, 1)),              # layer 1
                full((H2, H1)), full((H2, 1)),                # layer 2
                full((1, H2)), full((1, 1)),                  # layer 3 (logit diff)
            ],
            out_specs=pl.BlockSpec((OUT_F, bb), lambda i: (0, i)),
        ),
        compiler_params=pltpu.CompilerParams(
            dimension_semantics=("parallel",),  # shards grid steps across v7x TCs
        ),
        cost_estimate=cost,
    )(x_t, w1_t, b1_c, w2_t, b2_c, w3_d, b3_d)

    return out_t[:, :B].T  # back to the torch [B, 2] convention


def init_params(key):
    """Deterministic init mimicking torch.nn.Linear default (U[-1/sqrt(fan_in), +])."""
    ks = jax.random.split(key, 6)

    def linear(kw, kb, fan_in, fan_out):
        bound = 1.0 / jnp.sqrt(jnp.float32(fan_in))
        w = jax.random.uniform(kw, (fan_in, fan_out), jnp.float32, -bound, bound)
        b = jax.random.uniform(kb, (1, fan_out), jnp.float32, -bound, bound)
        return w, b

    w1, b1 = linear(ks[0], ks[1], IN_F, H1)
    w2, b2 = linear(ks[2], ks[3], H1, H2)
    w3, b3 = linear(ks[4], ks[5], H2, OUT_F)
    return (w1, b1, w2, b2, w3, b3)


def actor_ref(x, params):
    """Pure-JAX reference (standard softmax path) for correctness checks."""
    w1, b1, w2, b2, w3, b3 = params
    h = _leaky_relu(x @ w1 + b1)
    h = _leaky_relu(h @ w2 + b2)
    return jax.nn.softmax(h @ w3 + b3, axis=-1)


if __name__ == "__main__":
    key = jax.random.PRNGKey(0)
    k_params, k_x = jax.random.split(key)

    params = init_params(k_params)

    # 1024 rows -> 2 "parallel" grid steps of block_b=512 (both v7x TensorCores),
    # still tiny in VMEM/HBM terms on every generation.
    B = 1024
    x = jax.random.normal(k_x, (B, IN_F), jnp.float32)

    out = jax.block_until_ready(actor_forward(x, params))
    ref = actor_ref(x, params)
    assert out.shape == (B, OUT_F)
    assert jnp.allclose(out, ref, atol=2e-5, rtol=1e-5)
    assert jnp.allclose(jnp.sum(out, axis=-1), jnp.ones((B,)), atol=1e-5)

    # Ragged batch exercises the wrapper-side padding path (no divisibility req).
    B2 = 10
    x2 = jax.random.normal(jax.random.PRNGKey(1), (B2, IN_F), jnp.float32)
    out2 = jax.block_until_ready(actor_forward(x2, params))
    assert out2.shape == (B2, OUT_F)
    assert jnp.allclose(out2, actor_ref(x2, params), atol=2e-5, rtol=1e-5)

    print("KERNEL_OK")
</pallas_src>

<mosaic_0001>
module attributes {stable_mosaic.version = 11 : i64} {
  func.func @actor_kernel(%arg0: i32, %arg1: memref<12x512xf32, #tpu.memory_space<vmem>>, %arg2: memref<64x12xf32, #tpu.memory_space<vmem>>, %arg3: memref<64x1xf32, #tpu.memory_space<vmem>>, %arg4: memref<32x64xf32, #tpu.memory_space<vmem>>, %arg5: memref<32x1xf32, #tpu.memory_space<vmem>>, %arg6: memref<1x32xf32, #tpu.memory_space<vmem>>, %arg7: memref<1x1xf32, #tpu.memory_space<vmem>>, %arg8: memref<2x512xf32, #tpu.memory_space<vmem>>) attributes {dimension_semantics = [#tpu.dimension_semantics<parallel>], iteration_bounds = array<i64: 2>, scalar_prefetch = 0 : i64, scratch_operands = 0 : i64, tpu.core_type = #tpu.core_type<tc>, window_params = [{transform_indices = @transform_0, window_bounds = array<i64: 12, 512>}, {pipeline_mode = #tpu.pipeline_mode<synchronous>, transform_indices = @transform_1, window_bounds = array<i64: 64, 12>}, {pipeline_mode = #tpu.pipeline_mode<synchronous>, transform_indices = @transform_2, window_bounds = array<i64: 64, 1>}, {pipeline_mode = #tpu.pipeline_mode<synchronous>, transform_indices = @transform_3, window_bounds = array<i64: 32, 64>}, {pipeline_mode = #tpu.pipeline_mode<synchronous>, transform_indices = @transform_4, window_bounds = array<i64: 32, 1>}, {pipeline_mode = #tpu.pipeline_mode<synchronous>, transform_indices = @transform_5, window_bounds = array<i64: 1, 32>}, {pipeline_mode = #tpu.pipeline_mode<synchronous>, transform_indices = @transform_6, window_bounds = array<i64: 1, 1>}, {transform_indices = @transform_7, window_bounds = array<i64: 2, 512>}]} {
    %c0 = arith.constant 0 : index
    %c0_0 = arith.constant 0 : index
    %0 = vector.load %arg1[%c0, %c0_0] : memref<12x512xf32, #tpu.memory_space<vmem>>, vector<12x512xf32>
    %c0_1 = arith.constant 0 : index
    %c0_2 = arith.constant 0 : index
    %1 = vector.load %arg2[%c0_1, %c0_2] : memref<64x12xf32, #tpu.memory_space<vmem>>, vector<64x12xf32>
    %cst = arith.constant dense<0.000000e+00> : vector<64x512xf32>
    %2 = tpu.matmul %1, %0, %cst {dimension_numbers = #tpu.dot_dimension_numbers<[1], [0], [0], [1], [0, 0, 1, 1], [], []>} : vector<64x12xf32>, vector<12x512xf32>, vector<64x512xf32> -> vector<64x512xf32>
    %c0_3 = arith.constant 0 : index
    %c0_4 = arith.constant 0 : index
    %3 = vector.load %arg3[%c0_3, %c0_4] : memref<64x1xf32, #tpu.memory_space<vmem>>, vector<64x1xf32>
    %4 = vector.broadcast %3 : vector<64x1xf32> to vector<64x512xf32>
    %5 = arith.addf %2, %4 : vector<64x512xf32>
    %cst_5 = arith.constant 0.000000e+00 : f32
    %6 = vector.broadcast %cst_5 : f32 to vector<64x512xf32>
    %7 = arith.cmpf oge, %5, %6 : vector<64x512xf32>
    %cst_6 = arith.constant 0.00999999977 : f32
    %8 = vector.broadcast %cst_6 : f32 to vector<64x512xf32>
    %9 = arith.mulf %8, %5 : vector<64x512xf32>
    %10 = arith.select %7, %5, %9 : vector<64x512xi1>, vector<64x512xf32>
    %c0_7 = arith.constant 0 : index
    %c0_8 = arith.constant 0 : index
    %11 = vector.load %arg4[%c0_7, %c0_8] : memref<32x64xf32, #tpu.memory_space<vmem>>, vector<32x64xf32>
    %cst_9 = arith.constant dense<0.000000e+00> : vector<32x512xf32>
    %12 = tpu.matmul %11, %10, %cst_9 {dimension_numbers = #tpu.dot_dimension_numbers<[1], [0], [0], [1], [0, 0, 1, 1], [], []>} : vector<32x64xf32>, vector<64x512xf32>, vector<32x512xf32> -> vector<32x512xf32>
    %c0_10 = arith.constant 0 : index
    %c0_11 = arith.constant 0 : index
    %13 = vector.load %arg5[%c0_10, %c0_11] : memref<32x1xf32, #tpu.memory_space<vmem>>, vector<32x1xf32>
    %14 = vector.broadcast %13 : vector<32x1xf32> to vector<32x512xf32>
    %15 = arith.addf %12, %14 : vector<32x512xf32>
    %cst_12 = arith.constant 0.000000e+00 : f32
    %16 = vector.broadcast %cst_12 : f32 to vector<32x512xf32>
    %17 = arith.cmpf oge, %15, %16 : vector<32x512xf32>
    %cst_13 = arith.constant 0.00999999977 : f32
    %18 = vector.broadcast %cst_13 : f32 to vector<32x512xf32>
    %19 = arith.mulf %18, %15 : vector<32x512xf32>
    %20 = arith.select %17, %15, %19 : vector<32x512xi1>, vector<32x512xf32>
    %c0_14 = arith.constant 0 : index
    %c0_15 = arith.constant 0 : index
    %21 = vector.load %arg6[%c0_14, %c0_15] : memref<1x32xf32, #tpu.memory_space<vmem>>, vector<1x32xf32>
    %cst_16 = arith.constant dense<0.000000e+00> : vector<1x512xf32>
    %22 = tpu.matmul %21, %20, %cst_16 {dimension_numbers = #tpu.dot_dimension_numbers<[1], [0], [0], [1], [0, 0, 1, 1], [], []>} : vector<1x32xf32>, vector<32x512xf32>, vector<1x512xf32> -> vector<1x512xf32>
    %c0_17 = arith.constant 0 : index
    %c0_18 = arith.constant 0 : index
    %23 = vector.load %arg7[%c0_17, %c0_18] : memref<1x1xf32, #tpu.memory_space<vmem>>, vector<1x1xf32>
    %24 = vector.broadcast %23 : vector<1x1xf32> to vector<1x512xf32>
    %25 = arith.addf %22, %24 : vector<1x512xf32>
    %cst_19 = arith.constant 0.000000e+00 : f32
    %26 = vector.broadcast %cst_19 : f32 to vector<1x512xf32>
    %27 = arith.subf %26, %25 : vector<1x512xf32>
    %28 = math.exp %27 : vector<1x512xf32>
    %cst_20 = arith.constant 1.000000e+00 : f32
    %29 = vector.broadcast %cst_20 : f32 to vector<1x512xf32>
    %30 = arith.addf %29, %28 : vector<1x512xf32>
    %31 = tpu.reciprocal %30 : vector<1x512xf32> -> vector<1x512xf32>
    %cst_21 = arith.constant 1.000000e+00 : f32
    %32 = vector.broadcast %cst_21 : f32 to vector<1x512xf32>
    %33 = arith.subf %32, %31 : vector<1x512xf32>
    %c0_22 = arith.constant 0 : index
    %c0_23 = arith.constant 0 : index
    %34 = vector.load %arg8[%c0_22, %c0_23] : memref<2x512xf32, #tpu.memory_space<vmem>>, vector<1x512xf32>
    tpu.vector_store %arg8[%c0_22, %c0_23], %33 {strides = array<i32>} : memref<2x512xf32, #tpu.memory_space<vmem>>, vector<1x512xf32>,
    %c1 = arith.constant 1 : index
    %c0_24 = arith.constant 0 : index
    %35 = vector.load %arg8[%c1, %c0_24] : memref<2x512xf32, #tpu.memory_space<vmem>>, vector<1x512xf32>
    tpu.vector_store %arg8[%c1, %c0_24], %31 {strides = array<i32>} : memref<2x512xf32, #tpu.memory_space<vmem>>, vector<1x512xf32>,
    return
  }
  func.func @transform_0(%arg0: i32) -> (i32, i32) {
    %c0_i32 = arith.constant 0 : i32
    %c0_i32_0 = arith.constant 0 : i32
    return %c0_i32, %arg0 : i32, i32
  }
  func.func @transform_1(%arg0: i32) -> (i32, i32) {
    %c0_i32 = arith.constant 0 : i32
    %c0_i32_0 = arith.constant 0 : i32
    %c0_i32_1 = arith.constant 0 : i32
    return %c0_i32, %c0_i32_0 : i32, i32
  }
  func.func @transform_2(%arg0: i32) -> (i32, i32) {
    %c0_i32 = arith.constant 0 : i32
    %c0_i32_0 = arith.constant 0 : i32
    %c0_i32_1 = arith.constant 0 : i32
    return %c0_i32, %c0_i32_0 : i32, i32
  }
  func.func @transform_3(%arg0: i32) -> (i32, i32) {
    %c0_i32 = arith.constant 0 : i32
    %c0_i32_0 = arith.constant 0 : i32
    %c0_i32_1 = arith.constant 0 : i32
    return %c0_i32, %c0_i32_0 : i32, i32
  }
  func.func @transform_4(%arg0: i32) -> (i32, i32) {
    %c0_i32 = arith.constant 0 : i32
    %c0_i32_0 = arith.constant 0 : i32
    %c0_i32_1 = arith.constant 0 : i32
    return %c0_i32, %c0_i32_0 : i32, i32
  }
  func.func @transform_5(%arg0: i32) -> (i32, i32) {
    %c0_i32 = arith.constant 0 : i32
    %c0_i32_0 = arith.constant 0 : i32
    %c0_i32_1 = arith.constant 0 : i32
    return %c0_i32, %c0_i32_0 : i32, i32
  }
  func.func @transform_6(%arg0: i32) -> (i32, i32) {
    %c0_i32 = arith.constant 0 : i32
    %c0_i32_0 = arith.constant 0 : i32
    %c0_i32_1 = arith.constant 0 : i32
    return %c0_i32, %c0_i32_0 : i32, i32
  }
  func.func @transform_7(%arg0: i32) -> (i32, i32) {
    %c0_i32 = arith.constant 0 : i32
    %c0_i32_0 = arith.constant 0 : i32
    return %c0_i32, %arg0 : i32, i32
  }
}

</mosaic_0001>

<llo_original>
// kernel: actor_forward.1
$region0: #{actor_forward.1}
  #allocation0 [shape = 'u32[]', space=smem, size = 0x4, offset = 0x4, fixed_abs, tag = 'smem constant byte address 0x4 - core index']
  #allocation1 [shape = 'u32[144,128]{1,0:T(1,128)}', space=vmem, size = 0x12000, scoped, tag = 'internal scratch']
  #allocation2 [shape = 'f32[1,1]{1,0:T(1,128)S(1)}', space=vmem, size = 0x200, scoped, tag = 'scoped memory for actor_forward.1']
  %s0 = inlined_call_operand.vmem [shape: f32[12,1024], index: 0, kind: input, shape index: {}]
  %s1 = inlined_call_operand.vmem [shape: f32[64,12], index: 1, kind: input, shape index: {}]
  %s2 = inlined_call_operand.vmem [shape: f32[64,1], index: 2, kind: input, shape index: {}]
  %s3 = inlined_call_operand.vmem [shape: f32[32,64], index: 3, kind: input, shape index: {}]
  %s4 = inlined_call_operand.vmem [shape: f32[32,1], index: 4, kind: input, shape index: {}]
  %s5 = inlined_call_operand.vmem [shape: f32[1,32], index: 5, kind: input, shape index: {}]
  %s6 = inlined_call_operand.<no memory space> [shape: f32[1,1], index: 6, kind: input, shape index: {}]
  %s7 = inlined_call_operand.hbm [shape: f32[2,1024], index: 7, kind: output, shape index: {}]
  %s8 = sld [smem:[#allocation0]]
  $region84: #{actor_forward.1} parent=0
    _
  %s10 = ssub.s32 1, %s8
  %s11 = scalar_select 0, %s10, %s8
  %v12 = vstv %s6
  %13 = vst [vmem:[#allocation2] sm:$0x1] %v12
  $region1: #{actor_forward.1} parent=0
    #allocation3 [shape = 'u8[65536]{0}', space=vmem, size = 0x10000, scoped, tag = 'input window, operand 0']
    #allocation4 [shape = 'u8[8192]{0}', space=vmem, size = 0x2000, scoped, tag = 'output window, operand 0']
    #allocation5 [shape = 's32[2]{0}', space=sflag, size = 0x8, scoped, tag = 'scoped memory for actor_forward.1']
    %14 = vsyncpa [#allocation5], 0
    %s15 = scalar_lea.sflag [#allocation5], 1
    %16 = vsyncpa %s15, 0
    loop: start=0, step=1, limit=4
    $region2: #{actor_forward.1} parent=1 // loop_pre_header
      _
    $region3: #{actor_forward.1} parent=1 // loop_header
      %s18 = sphi 0, %s22
      %p19 = scmp.ge.s32.totalorder %s18, 4
      %s28 = sphi 0, %s30
      %s31 = sphi 0, %s28
      %s32 = sphi 0, %s31
      %s48 = sphi 0, %s32
      %s52 = sphi 0, %s52
      %s54 = sphi 0, %s52
      %s55 = sphi 0, %s54
      %s69 = sphi 0, %s55
      %s73 = sphi 0, %s73
      %s75 = sphi 0, %s73
      %s76 = sphi 0, %s75
      %s90 = sphi 0, %s76
      %s94 = sphi 0, %s94
      %s96 = sphi 0, %s94
      %s97 = sphi 0, %s96
      %s111 = sphi 0, %s97
      %s115 = sphi 0, %s115
      %s117 = sphi 0, %s115
      %s118 = sphi 0, %s117
      %s132 = sphi 0, %s118
      %s136 = sphi 0, %s136
      %s138 = sphi 0, %s136
      %s139 = sphi 0, %s138
      %s153 = sphi 0, %s139
      %s157 = sphi 0, %s157
      %s159 = sphi 0, %s157
      %s160 = sphi 0, %s159
      %s174 = sphi 0, %s160
      %s180 = sphi 0, %s182
      %s183 = sphi 0, %s180
      %s184 = sphi 0, %s183
      %s200 = sphi 0, %s184
    $region4: #{actor_forward.1} parent=1 // loop_header_branch
      %21 = sbr.rel (%p19) target = $region8
    $region5: #{actor_forward.1} parent=1 // loop_body
      %s23 = ssub.s32 %s18, 1
      %s24 = ssub.s32 %s18, 2
      %s25 = sadd.s32 %s18, 1
      %s26 = ssub.s32 %s18, %s25
      %p27 = scmp.eq.s32.totalorder %s26, 0
      %s29 = sadd.s32 %s28, 1
      %s30 = scalar_select %p27, %s28, %s29
      %p33 = pneg %p27
      %p34 = scmp.eq.s32.totalorder %s18, 1
      %p35 = por %p33, %p34
      %p36 = scmp.ne.s32.totalorder %s28, %s31
      %p37 = scmp.eq.s32.totalorder %s18, 0
      %p38 = por %p36, %p37
      %p39 = scmp.ne.s32.totalorder %s28, %s31
      %p40 = scmp.eq.s32.totalorder %s23, 1
      %p41 = por %p39, %p40
      %p42 = scmp.ne.s32.totalorder %s31, %s32
      %p43 = scmp.eq.s32.totalorder %s23, 0
      %p44 = por %p42, %p43
      %p45 = scmp.ne.s32.totalorder %s31, %s32
      %p46 = scmp.eq.s32.totalorder %s24, 1
      %p47 = por %p45, %p46
      %p49 = scmp.ne.s32.totalorder %s32, %s48
      %p50 = scmp.eq.s32.totalorder %s24, 0
      %p51 = por %p49, %p50
      %s53 = sadd.s32 %s52, 1
      %p56 = scmp.eq.s32.totalorder %s18, 1
      %p57 = scmp.ne.s32.totalorder %s52, %s54
      %p58 = scmp.eq.s32.totalorder %s18, 0
      %p59 = por %p57, %p58
      %p60 = scmp.ne.s32.totalorder %s52, %s54
      %p61 = scmp.eq.s32.totalorder %s23, 1
      %p62 = por %p60, %p61
      %p63 = scmp.ne.s32.totalorder %s54, %s55
      %p64 = scmp.eq.s32.totalorder %s23, 0
      %p65 = por %p63, %p64
      %p66 = scmp.ne.s32.totalorder %s54, %s55
      %p67 = scmp.eq.s32.totalorder %s24, 1
      %p68 = por %p66, %p67
      %p70 = scmp.ne.s32.totalorder %s55, %s69
      %p71 = scmp.eq.s32.totalorder %s24, 0
      %p72 = por %p70, %p71
      %s74 = sadd.s32 %s73, 1
      %p77 = scmp.eq.s32.totalorder %s18, 1
      %p78 = scmp.ne.s32.totalorder %s73, %s75
      %p79 = scmp.eq.s32.totalorder %s18, 0
      %p80 = por %p78, %p79
      %p81 = scmp.ne.s32.totalorder %s73, %s75
      %p82 = scmp.eq.s32.totalorder %s23, 1
      %p83 = por %p81, %p82
      %p84 = scmp.ne.s32.totalorder %s75, %s76
      %p85 = scmp.eq.s32.totalorder %s23, 0
      %p86 = por %p84, %p85
      %p87 = scmp.ne.s32.totalorder %s75, %s76
      %p88 = scmp.eq.s32.totalorder %s24, 1
      %p89 = por %p87, %p88
      %p91 = scmp.ne.s32.totalorder %s76, %s90
      %p92 = scmp.eq.s32.totalorder %s24, 0
      %p93 = por %p91, %p92
      %s95 = sadd.s32 %s94, 1
      %p98 = scmp.eq.s32.totalorder %s18, 1
      %p99 = scmp.ne.s32.totalorder %s94, %s96
      %p100 = scmp.eq.s32.totalorder %s18, 0
      %p101 = por %p99, %p100
      %p102 = scmp.ne.s32.totalorder %s94, %s96
      %p103 = scmp.eq.s32.totalorder %s23, 1
      %p104 = por %p102, %p103
      %p105 = scmp.ne.s32.totalorder %s96, %s97
      %p106 = scmp.eq.s32.totalorder %s23, 0
      %p107 = por %p105, %p106
      %p108 = scmp.ne.s32.totalorder %s96, %s97
      %p109 = scmp.eq.s32.totalorder %s24, 1
      %p110 = por %p108, %p109
      %p112 = scmp.ne.s32.totalorder %s97, %s111
      %p113 = scmp.eq.s32.totalorder %s24, 0
      %p114 = por %p112, %p113
      %s116 = sadd.s32 %s115, 1
      %p119 = scmp.eq.s32.totalorder %s18, 1
      %p120 = scmp.ne.s32.totalorder %s115, %s117
      %p121 = scmp.eq.s32.totalorder %s18, 0
      %p122 = por %p120, %p121
      %p123 = scmp.ne.s32.totalorder %s115, %s117
      %p124 = scmp.eq.s32.totalorder %s23, 1
      %p125 = por %p123, %p124
      %p126 = scmp.ne.s32.totalorder %s117, %s118
      %p127 = scmp.eq.s32.totalorder %s23, 0
      %p128 = por %p126, %p127
      %p129 = scmp.ne.s32.totalorder %s117, %s118
      %p130 = scmp.eq.s32.totalorder %s24, 1
      %p131 = por %p129, %p130
      %p133 = scmp.ne.s32.totalorder %s118, %s132
      %p134 = scmp.eq.s32.totalorder %s24, 0
      %p135 = por %p133, %p134
      %s137 = sadd.s32 %s136, 1
      %p140 = scmp.eq.s32.totalorder %s18, 1
      %p141 = scmp.ne.s32.totalorder %s136, %s138
      %p142 = scmp.eq.s32.totalorder %s18, 0
      %p143 = por %p141, %p142
      %p144 = scmp.ne.s32.totalorder %s136, %s138
      %p145 = scmp.eq.s32.totalorder %s23, 1
      %p146 = por %p144, %p145
      %p147 = scmp.ne.s32.totalorder %s138, %s139
      %p148 = scmp.eq.s32.totalorder %s23, 0
      %p149 = por %p147, %p148
      %p150 = scmp.ne.s32.totalorder %s138, %s139
      %p151 = scmp.eq.s32.totalorder %s24, 1
      %p152 = por %p150, %p151
      %p154 = scmp.ne.s32.totalorder %s139, %s153
      %p155 = scmp.eq.s32.totalorder %s24, 0
      %p156 = por %p154, %p155
      %s158 = sadd.s32 %s157, 1
      %p161 = scmp.eq.s32.totalorder %s18, 1
      %p162 = scmp.ne.s32.totalorder %s157, %s159
      %p163 = scmp.eq.s32.totalorder %s18, 0
      %p164 = por %p162, %p163
      %p165 = scmp.ne.s32.totalorder %s157, %s159
      %p166 = scmp.eq.s32.totalorder %s23, 1
      %p167 = por %p165, %p166
      %p168 = scmp.ne.s32.totalorder %s159, %s160
      %p169 = scmp.eq.s32.totalorder %s23, 0
      %p170 = por %p168, %p169
      %p171 = scmp.ne.s32.totalorder %s159, %s160
      %p172 = scmp.eq.s32.totalorder %s24, 1
      %p173 = por %p171, %p172
      %p175 = scmp.ne.s32.totalorder %s160, %s174
      %p176 = scmp.eq.s32.totalorder %s24, 0
      %p177 = por %p175, %p176
      %s178 = ssub.s32 %s18, %s25
      %p179 = scmp.eq.s32.totalorder %s178, 0
      %s181 = sadd.s32 %s180, 1
      %s182 = scalar_select %p179, %s180, %s181
      %p185 = pneg %p179
      %p186 = scmp.eq.s32.totalorder %s18, 1
      %p187 = por %p185, %p186
      %p188 = scmp.ne.s32.totalorder %s180, %s183
      %p189 = scmp.eq.s32.totalorder %s18, 0
      %p190 = por %p188, %p189
      %p191 = scmp.ne.s32.totalorder %s180, %s183
      %p192 = scmp.eq.s32.totalorder %s23, 1
      %p193 = por %p191, %p192
      %p194 = scmp.ne.s32.totalorder %s183, %s184
      %p195 = scmp.eq.s32.totalorder %s23, 0
      %p196 = por %p194, %p195
      %p197 = scmp.ne.s32.totalorder %s183, %s184
      %p198 = scmp.eq.s32.totalorder %s24, 1
      %p199 = por %p197, %p198
      %p201 = scmp.ne.s32.totalorder %s184, %s200
      %p202 = scmp.eq.s32.totalorder %s24, 0
      %p203 = por %p201, %p202
      %p204 = scmp.le.s32.totalorder 1, %s18
      %p205 = scmp.lt.s32.totalorder %s18, 3
      %p206 = pnand %p204, %p205
      %p207 = pneg %p206
      // Predicated region
      $region9: #{actor_forward.1} parent=5 // pred_check
        _
      $region10: #{actor_forward.1} parent=5 // pred_check_branch
        %209 = sbr.rel (%p206) target = $region12
      $region11: #{actor_forward.1} parent=5 // pred_region
        %s210 = ssub.s32 %s18, 1
        // Predicated region
        $region13: #{actor_forward.1} parent=11 // pred_check
          %p211 = pneg %p65
        $region14: #{actor_forward.1} parent=11 // pred_check_branch
          %213 = sbr.rel (%p211) target = $region16
        $region15: #{actor_forward.1} parent=11 // pred_region
          _
        $region16: #{actor_forward.1} parent=11 // pred_fallthru
          _
        // Predicated region
        $region17: #{actor_forward.1} parent=11 // pred_check
          %p214 = pneg %p86
        $region18: #{actor_forward.1} parent=11 // pred_check_branch
          %216 = sbr.rel (%p214) target = $region20
        $region19: #{actor_forward.1} parent=11 // pred_region
          _
        $region20: #{actor_forward.1} parent=11 // pred_fallthru
          _
        // Predicated region
        $region21: #{actor_forward.1} parent=11 // pred_check
          %p217 = pneg %p107
        $region22: #{actor_forward.1} parent=11 // pred_check_branch
          %219 = sbr.rel (%p217) target = $region24
        $region23: #{actor_forward.1} parent=11 // pred_region
          _
        $region24: #{actor_forward.1} parent=11 // pred_fallthru
          _
        // Predicated region
        $region25: #{actor_forward.1} parent=11 // pred_check
          %p220 = pneg %p128
        $region26: #{actor_forward.1} parent=11 // pred_check_branch
          %222 = sbr.rel (%p220) target = $region28
        $region27: #{actor_forward.1} parent=11 // pred_region
          _
        $region28: #{actor_forward.1} parent=11 // pred_fallthru
          _
        // Predicated region
        $region29: #{actor_forward.1} parent=11 // pred_check
          %p223 = pneg %p149
        $region30: #{actor_forward.1} parent=11 // pred_check_branch
          %225 = sbr.rel (%p223) target = $region32
        $region31: #{actor_forward.1} parent=11 // pred_region
          _
        $region32: #{actor_forward.1} parent=11 // pred_fallthru
          _
        // Predicated region
        $region33: #{actor_forward.1} parent=11 // pred_check
          %p226 = pneg %p170
        $region34: #{actor_forward.1} parent=11 // pred_check_branch
          %228 = sbr.rel (%p226) target = $region36
        $region35: #{actor_forward.1} parent=11 // pred_region
          _
        $region36: #{actor_forward.1} parent=11 // pred_fallthru
          _
      $region12: #{actor_forward.1} parent=5 // pred_fallthru
        _
      %p229 = scmp.lt.s32.totalorder %s18, 2
      // Predicated region
      $region37: #{actor_forward.1} parent=5 // pred_check
        %p230 = pneg %p229
      $region38: #{actor_forward.1} parent=5 // pred_check_branch
        %232 = sbr.rel (%p230) target = $region40
      $region39: #{actor_forward.1} parent=5 // pred_region
        // Predicated region
        $region41: #{actor_forward.1} parent=39 // pred_check
          %p233 = pneg %p38
        $region42: #{actor_forward.1} parent=39 // pred_check_branch
          %235 = sbr.rel (%p233) target = $region44
        $region43: #{actor_forward.1} parent=39 // pred_region
          %s236 = sand.u32 %s28, 1
          %s237 = sand.u32 %s28, 1
          %s238 = smul.addr %s237, 64
          %s239 = scalar_lea.vmem [#allocation3], %s238
          %s240 = smul.u32 4, %s18
          %s241 = smul.addr %s240, 8
          %s242 = scalar_lea.vmem %s0, %s241
          // Predicated region
          $region45: #{actor_forward.1} parent=43 // pred_check
            _
          $region46: #{actor_forward.1} parent=43 // pred_check_branch
            %244 = sbr.rel (0) target = $region48
          $region47: #{actor_forward.1} parent=43 // pred_region
            // Predicated region
            $region49: #{actor_forward.1} parent=47 // pred_check
              _
            $region50: #{actor_forward.1} parent=47 // pred_check_branch
              %246 = sbr.rel (0) target = $region52
            $region51: #{actor_forward.1} parent=47 // pred_region
              loop: start=0, step=1, limit=1
              $region53: #{actor_forward.1} parent=51 // loop_pre_header
                _
              $region54: #{actor_forward.1} parent=51 // loop_header
                %s248 = sphi 0, %s252
                %p249 = scmp.ge.s32.totalorder %s248, 1
                %s253 = sphi %s242, %s242
                %s254 = sphi %s239, %s239
              $region55: #{actor_forward.1} parent=51 // loop_header_branch
                %251 = sbr.rel (%p249) target = $region59
              $region56: #{actor_forward.1} parent=51 // loop_body
                %v255 = vld [vmem:[%s253] sm:$0xff]
                %256 = vst [vmem:[%s254] sm:$0xff] %v255
                %v257 = vld [vmem:[%s253 + $0x8] sm:$0xff]
                %258 = vst [vmem:[%s254 + $0x8] sm:$0xff] %v257
                %v259 = vld [vmem:[%s253 + $0x10] sm:$0xff]
                %260 = vst [vmem:[%s254 + $0x10] sm:$0xff] %v259
                %v261 = vld [vmem:[%s253 + $0x18] sm:$0xff]
                %262 = vst [vmem:[%s254 + $0x18] sm:$0xff] %v261
                %v263 = vld [vmem:[%s253 + $0x40] sm:$0xff]
                %264 = vst [vmem:[%s254 + $0x20] sm:$0xff] %v263
                %v265 = vld [vmem:[%s253 + $0x48] sm:$0xff]
                %266 = vst [vmem:[%s254 + $0x28] sm:$0xff] %v265
                %v267 = vld [vmem:[%s253 + $0x50] sm:$0xff]
                %268 = vst [vmem:[%s254 + $0x30] sm:$0xff] %v267
                %v269 = vld [vmem:[%s253 + $0x58] sm:$0xff]
                %270 = vst [vmem:[%s254 + $0x38] sm:$0xff] %v269
              $region57: #{actor_forward.1} parent=51 // loop_footer
                %s252 = sadd.s32 1, %s248
              $region58: #{actor_forward.1} parent=51 // loop_footer_branch
                %247 = sbr.rel target = $region54
              $region59: #{actor_forward.1} parent=51 // loop_exit
                _
            $region52: #{actor_forward.1} parent=47 // pred_fallthru
              _
            // Predicated region
            $region60: #{actor_forward.1} parent=47 // pred_check
              _
            $region61: #{actor_forward.1} parent=47 // pred_check_branch
              %272 = sbr.rel target = $region63
            $region62: #{actor_forward.1} parent=47 // pred_region
              _
            $region63: #{actor_forward.1} parent=47 // pred_fallthru
              _
          $region48: #{actor_forward.1} parent=43 // pred_fallthru
            _
          %273 = vnop
        $region44: #{actor_forward.1} parent=39 // pred_fallthru
          _
      $region40: #{actor_forward.1} parent=5 // pred_fallthru
        _
      %p274 = scmp.le.s32.totalorder 1, %s18
      %p275 = scmp.lt.s32.totalorder %s18, 3
      %p276 = pnand %p274, %p275
      %p277 = pneg %p276
      // Predicated region
      $region64: #{actor_forward.1} parent=5 // pred_check
        _
      $region65: #{actor_forward.1} parent=5 // pred_check_branch
        %279 = sbr.rel (%p276) target = $region67
      $region66: #{actor_forward.1} parent=5 // pred_region
        %s280 = ssub.s32 %s18, 1
        %s281 = sand.u32 %s31, 1
        %s282 = sand.u32 %s31, 1
        %s283 = smul.addr %s282, 64
        %s284 = scalar_lea.vmem [#allocation3], %s283
        // Predicated region
        $region68: #{actor_forward.1} parent=66 // pred_check
          %p285 = pneg %p44
        $region69: #{actor_forward.1} parent=66 // pred_check_branch
          %287 = sbr.rel (%p285) target = $region71
        $region70: #{actor_forward.1} parent=66 // pred_region
          _
        $region71: #{actor_forward.1} parent=66 // pred_fallthru
          _
        %s288 = sand.u32 %s31, 1
        %s289 = sand.u32 %s31, 1
        %s290 = smul.addr %s289, 64
        %s291 = scalar_lea.vmem [#allocation3], %s290
        %p292 = pneg %p44
        %p293 = pneg %p41
        %p294 = pneg %p65
        %p295 = pneg %p62
        %p296 = pneg %p86
        %p297 = pneg %p83
        %p298 = pneg %p107
        %p299 = pneg %p104
        %p300 = pneg %p128
        %p301 = pneg %p125
        %p302 = pneg %p149
        %p303 = pneg %p146
        %p304 = pneg %p170
        %p305 = pneg %p167
        %p306 = pneg %p196
        %p307 = pneg %p193
        %s308 = sand.u32 %s183, 1
        %s309 = scalar_lea.sflag [#allocation5], %s308
        %s310 = sand.u32 %s183, 1
        %s311 = smul.addr %s310, 8
        %s312 = scalar_lea.vmem [#allocation4], %s311
        %s313 = smul.u32 4, %s23
        %s314 = smul.u32 4, %s23
        %v315 = vld [vmem:[%s284] sm:$0xff]
        %v316 = vld [vmem:[%s284 + $0x8] sm:$0xff]
        %v317 = vld [vmem:[%s284 + $0x10] sm:$0xff]
        %v318 = vld [vmem:[%s284 + $0x18] sm:$0xff]
        %v319 = vld [vmem:[%s284 + $0x20] sm:$0xf]
        %v320 = vld [vmem:[%s284 + $0x28] sm:$0xf]
        %v321 = vld [vmem:[%s284 + $0x30] sm:$0xf]
        %v322 = vld [vmem:[%s284 + $0x38] sm:$0xf]
        %v323 = vld [vmem:[%s1] sm:$0xff]
        %v324 = vld [vmem:[%s1 + $0x8] sm:$0xff]
        %v325 = vld [vmem:[%s1 + $0x10] sm:$0xff]
        %v326 = vld [vmem:[%s1 + $0x18] sm:$0xff]
        %v327 = vld [vmem:[%s1 + $0x20] sm:$0xff]
        %v328 = vld [vmem:[%s1 + $0x28] sm:$0xff]
        %v329 = vld [vmem:[%s1 + $0x30] sm:$0xff]
        %v330 = vld [vmem:[%s1 + $0x38] sm:$0xff]
        %v331 = vld [vmem:[%s2] sm:$0xff]
        %v332 = vld [vmem:[%s2 + $0x8] sm:$0xff]
        %v333 = vld [vmem:[%s2 + $0x10] sm:$0xff]
        %v334 = vld [vmem:[%s2 + $0x18] sm:$0xff]
        %v335 = vld [vmem:[%s2 + $0x20] sm:$0xff]
        %v336 = vld [vmem:[%s2 + $0x28] sm:$0xff]
        %v337 = vld [vmem:[%s2 + $0x30] sm:$0xff]
        %v338 = vld [vmem:[%s2 + $0x38] sm:$0xff]
        %340 = vset.pattern.permute.xlu0 0
        %341 = vperm.xlu0 %340, %v331
        %v342 = vpop.permute.xlu0 %341
        %345 = vset.pattern.permute.xlu0 0
        %346 = vperm.xlu0 %345, %v332
        %v347 = vpop.permute.xlu0 %346
        %350 = vset.pattern.permute.xlu0 0
        %351 = vperm.xlu0 %350, %v333
        %v352 = vpop.permute.xlu0 %351
        %355 = vset.pattern.permute.xlu0 0
        %356 = vperm.xlu0 %355, %v334
        %v357 = vpop.permute.xlu0 %356
        %360 = vset.pattern.permute.xlu0 0
        %361 = vperm.xlu0 %360, %v335
        %v362 = vpop.permute.xlu0 %361
        %365 = vset.pattern.permute.xlu0 0
        %366 = vperm.xlu0 %365, %v336
        %v367 = vpop.permute.xlu0 %366
        %370 = vset.pattern.permute.xlu0 0
        %371 = vperm.xlu0 %370, %v337
        %v372 = vpop.permute.xlu0 %371
        %375 = vset.pattern.permute.xlu0 0
        %376 = vperm.xlu0 %375, %v338
        %v377 = vpop.permute.xlu0 %376
        %vm379 = vcmask 97280
        %v381 = vsel %vm379, %v323, 0
        %v384 = vsel %vm379, %v324, 0
        %v387 = vsel %vm379, %v325, 0
        %v390 = vsel %vm379, %v326, 0
        %v393 = vsel %vm379, %v327, 0
        %v396 = vsel %vm379, %v328, 0
        %v399 = vsel %vm379, %v329, 0
        %v402 = vsel %vm379, %v330, 0
        %vm404 = vcmask 1043456
        %v406 = vsel %vm404, %v319, 0
        %v409 = vsel %vm404, %v320, 0
        %v412 = vsel %vm404, %v321, 0
        %v415 = vsel %vm404, %v322, 0
        %417 = vmatprep.subr.mxu0 %v316
        %418 = vmatpush1.msra.mxu0 %v315
        %419 = vmatprep.subr.mxu0 %v409
        %420 = vmatpush1.msra.mxu0 %v406
        %421 = vmatprep.subr.mxu0 0.0
        %422 = vmatpush1.msra.mxu0 0.0
        %423 = vmatprep.subr.mxu0 0.0
        %424 = vmatpush1.msra.mxu0 0.0
        %425 = vmatprep.subr.mxu0 0.0
        %426 = vmatpush1.msra.mxu0 0.0
        %427 = vmatprep.subr.mxu0 0.0
        %428 = vmatpush1.msra.mxu0 0.0
        %429 = vmatprep.subr.mxu0 0.0
        %430 = vmatpush1.msra.mxu0 0.0
        %431 = vmatprep.subr.mxu0 0.0
        %432 = vmatpush1.msra.mxu0 0.0
        %433 = vmatprep.subr.mxu0 0.0
        %434 = vmatpush1.msra.mxu0 0.0
        %435 = vmatprep.subr.mxu0 0.0
        %436 = vmatpush1.msra.mxu0 0.0
        %437 = vmatprep.subr.mxu0 0.0
        %438 = vmatpush1.msra.mxu0 0.0
        %439 = vmatprep.subr.mxu0 0.0
        %440 = vmatpush1.msra.mxu0 0.0
        %441 = vmatprep.subr.mxu0 0.0
        %442 = vmatpush1.msra.mxu0 0.0
        %443 = vmatprep.subr.mxu0 0.0
        %444 = vmatpush1.msra.mxu0 0.0
        %445 = vmatprep.subr.mxu0 0.0
        %446 = vmatpush1.msra.mxu0 0.0
        %447 = vmatprep.subr.mxu0 0.0
        %448 = vmatpush1.msra.mxu0 0.0
        %449 = vmatprep.subr.mxu0 0.0
        %450 = vmatpush1.msra.mxu0 0.0
        %451 = vmatprep.subr.mxu0 0.0
        %452 = vmatpush1.msra.mxu0 0.0
        %453 = vmatprep.subr.mxu0 0.0
        %454 = vmatpush1.msra.mxu0 0.0
        %455 = vmatprep.subr.mxu0 0.0
        %456 = vmatpush1.msra.mxu0 0.0
        %457 = vmatprep.subr.mxu0 0.0
        %458 = vmatpush1.msra.mxu0 0.0
        %459 = vmatprep.subr.mxu0 0.0
        %460 = vmatpush1.msra.mxu0 0.0
        %461 = vmatprep.subr.mxu0 0.0
        %462 = vmatpush1.msra.mxu0 0.0
        %463 = vmatprep.subr.mxu0 0.0
        %464 = vmatpush1.msra.mxu0 0.0
        %465 = vmatprep.subr.mxu0 0.0
        %466 = vmatpush1.msra.mxu0 0.0
        %467 = vmatprep.subr.mxu0 0.0
        %468 = vmatpush1.msra.mxu0 0.0
        %469 = vmatprep.subr.mxu0 0.0
        %470 = vmatpush1.msra.mxu0 0.0
        %471 = vmatprep.subr.mxu0 0.0
        %472 = vmatpush1.msra.mxu0 0.0
        %473 = vmatprep.subr.mxu0 0.0
        %474 = vmatpush1.msra.mxu0 0.0
        %475 = vmatprep.subr.mxu0 0.0
        %476 = vmatpush1.msra.mxu0 0.0
        %477 = vmatprep.subr.mxu0 0.0
        %478 = vmatpush1.msra.mxu0 0.0
        %479 = vmatprep.subr.mxu0 0.0
        %480 = vmatpush1.msra.mxu0 0.0
        %481 = vmatprep.mubr.f32.mxu0 0.0
        %482 = vmatmul.mubr.f32.gmra.mrb[0].mxu0 %v381
        %v483 = vpop.f32.mrb[0].mxu0
        %v484 = vadd.f32 %v342, %v483
        %v485 = vpop.f32.mrb[0].mxu0
        %v486 = vadd.f32 %v342, %v485
        %487 = vmatprep.mubr.f32.mxu0 0.0
        %488 = vmatmul.mubr.f32.gmra.mrb[0].mxu0 %v384
        %v489 = vpop.f32.mrb[0].mxu0
        %v490 = vadd.f32 %v347, %v489
        %v491 = vpop.f32.mrb[0].mxu0
        %v492 = vadd.f32 %v347, %v491
        %493 = vmatprep.mubr.f32.mxu0 0.0
        %494 = vmatmul.mubr.f32.gmra.mrb[0].mxu0 %v387
        %v495 = vpop.f32.mrb[0].mxu0
        %v496 = vadd.f32 %v352, %v495
        %v497 = vpop.f32.mrb[0].mxu0
        %v498 = vadd.f32 %v352, %v497
        %499 = vmatprep.mubr.f32.mxu0 0.0
        %500 = vmatmul.mubr.f32.gmra.mrb[0].mxu0 %v390
        %v501 = vpop.f32.mrb[0].mxu0
        %v502 = vadd.f32 %v357, %v501
        %v503 = vpop.f32.mrb[0].mxu0
        %v504 = vadd.f32 %v357, %v503
        %505 = vmatprep.mubr.f32.mxu0 0.0
        %506 = vmatmul.mubr.f32.gmra.mrb[0].mxu0 %v393
        %v507 = vpop.f32.mrb[0].mxu0
        %v508 = vadd.f32 %v362, %v507
        %v509 = vpop.f32.mrb[0].mxu0
        %v510 = vadd.f32 %v362, %v509
        %511 = vmatprep.mubr.f32.mxu0 0.0
        %512 = vmatmul.mubr.f32.gmra.mrb[0].mxu0 %v396
        %v513 = vpop.f32.mrb[0].mxu0
        %v514 = vadd.f32 %v367, %v513
        %v515 = vpop.f32.mrb[0].mxu0
        %v516 = vadd.f32 %v367, %v515
        %517 = vmatprep.mubr.f32.mxu0 0.0
        %518 = vmatmul.mubr.f32.gmra.mrb[0].mxu0 %v399
        %v519 = vpop.f32.mrb[0].mxu0
        %v520 = vadd.f32 %v372, %v519
        %v521 = vpop.f32.mrb[0].mxu0
        %v522 = vadd.f32 %v372, %v521
        %523 = vmatprep.mubr.f32.mxu0 0.0
        %524 = vmatmul.mubr.f32.gmra.mrb[0].mxu0 %v402
        %v525 = vpop.f32.mrb[0].mxu0
        %v526 = vadd.f32 %v377, %v525
        %v527 = vpop.f32.mrb[0].mxu0
        %v528 = vadd.f32 %v377, %v527
        %529 = vdwg.mxu0
        %530 = vmatprep.subr.mxu0 %v318
        %531 = vmatpush1.msra.mxu0 %v317
        %532 = vmatprep.subr.mxu0 %v415
        %533 = vmatpush1.msra.mxu0 %v412
        %534 = vmatprep.subr.mxu0 0.0
        %535 = vmatpush1.msra.mxu0 0.0
        %536 = vmatprep.subr.mxu0 0.0
        %537 = vmatpush1.msra.mxu0 0.0
        %538 = vmatprep.subr.mxu0 0.0
        %539 = vmatpush1.msra.mxu0 0.0
        %540 = vmatprep.subr.mxu0 0.0
        %541 = vmatpush1.msra.mxu0 0.0
        %542 = vmatprep.subr.mxu0 0.0
        %543 = vmatpush1.msra.mxu0 0.0
        %544 = vmatprep.subr.mxu0 0.0
        %545 = vmatpush1.msra.mxu0 0.0
        %546 = vmatprep.subr.mxu0 0.0
        %547 = vmatpush1.msra.mxu0 0.0
        %548 = vmatprep.subr.mxu0 0.0
        %549 = vmatpush1.msra.mxu0 0.0
        %550 = vmatprep.subr.mxu0 0.0
        %551 = vmatpush1.msra.mxu0 0.0
        %552 = vmatprep.subr.mxu0 0.0
        %553 = vmatpush1.msra.mxu0 0.0
        %554 = vmatprep.subr.mxu0 0.0
        %555 = vmatpush1.msra.mxu0 0.0
        %556 = vmatprep.subr.mxu0 0.0
        %557 = vmatpush1.msra.mxu0 0.0
        %558 = vmatprep.subr.mxu0 0.0
        %559 = vmatpush1.msra.mxu0 0.0
        %560 = vmatprep.subr.mxu0 0.0
        %561 = vmatpush1.msra.mxu0 0.0
        %562 = vmatprep.subr.mxu0 0.0
        %563 = vmatpush1.msra.mxu0 0.0
        %564 = vmatprep.subr.mxu0 0.0
        %565 = vmatpush1.msra.mxu0 0.0
        %566 = vmatprep.subr.mxu0 0.0
        %567 = vmatpush1.msra.mxu0 0.0
        %568 = vmatprep.subr.mxu0 0.0
        %569 = vmatpush1.msra.mxu0 0.0
        %570 = vmatprep.subr.mxu0 0.0
        %571 = vmatpush1.msra.mxu0 0.0
        %572 = vmatprep.subr.mxu0 0.0
        %573 = vmatpush1.msra.mxu0 0.0
        %574 = vmatprep.subr.mxu0 0.0
        %575 = vmatpush1.msra.mxu0 0.0
        %576 = vmatprep.subr.mxu0 0.0
        %577 = vmatpush1.msra.mxu0 0.0
        %578 = vmatprep.subr.mxu0 0.0
        %579 = vmatpush1.msra.mxu0 0.0
        %580 = vmatprep.subr.mxu0 0.0
        %581 = vmatpush1.msra.mxu0 0.0
        %582 = vmatprep.subr.mxu0 0.0
        %583 = vmatpush1.msra.mxu0 0.0
        %584 = vmatprep.subr.mxu0 0.0
        %585 = vmatpush1.msra.mxu0 0.0
        %586 = vmatprep.subr.mxu0 0.0
        %587 = vmatpush1.msra.mxu0 0.0
        %588 = vmatprep.subr.mxu0 0.0
        %589 = vmatpush1.msra.mxu0 0.0
        %590 = vmatprep.subr.mxu0 0.0
        %591 = vmatpush1.msra.mxu0 0.0
        %592 = vmatprep.subr.mxu0 0.0
        %593 = vmatpush1.msra.mxu0 0.0
        %594 = vmatprep.mubr.f32.mxu0 0.0
        %595 = vmatmul.mubr.f32.gmra.mrb[0].mxu0 %v381
        %v596 = vpop.f32.mrb[0].mxu0
        %v597 = vadd.f32 %v342, %v596
        %v598 = vpop.f32.mrb[0].mxu0
        %v599 = vadd.f32 %v342, %v598
        %600 = vmatprep.mubr.f32.mxu0 0.0
        %601 = vmatmul.mubr.f32.gmra.mrb[0].mxu0 %v384
        %v602 = vpop.f32.mrb[0].mxu0
        %v603 = vadd.f32 %v347, %v602
        %v604 = vpop.f32.mrb[0].mxu0
        %v605 = vadd.f32 %v347, %v604
        %606 = vmatprep.mubr.f32.mxu0 0.0
        %607 = vmatmul.mubr.f32.gmra.mrb[0].mxu0 %v387
        %v608 = vpop.f32.mrb[0].mxu0
        %v609 = vadd.f32 %v352, %v608
        %v610 = vpop.f32.mrb[0].mxu0
        %v611 = vadd.f32 %v352, %v610
        %612 = vmatprep.mubr.f32.mxu0 0.0
        %613 = vmatmul.mubr.f32.gmra.mrb[0].mxu0 %v390
        %v614 = vpop.f32.mrb[0].mxu0
        %v615 = vadd.f32 %v357, %v614
        %v616 = vpop.f32.mrb[0].mxu0
        %v617 = vadd.f32 %v357, %v616
        %618 = vmatprep.mubr.f32.mxu0 0.0
        %619 = vmatmul.mubr.f32.gmra.mrb[0].mxu0 %v393
        %v620 = vpop.f32.mrb[0].mxu0
        %v621 = vadd.f32 %v362, %v620
        %v622 = vpop.f32.mrb[0].mxu0
        %v623 = vadd.f32 %v362, %v622
        %624 = vmatprep.mubr.f32.mxu0 0.0
        %625 = vmatmul.mubr.f32.gmra.mrb[0].mxu0 %v396
        %v626 = vpop.f32.mrb[0].mxu0
        %v627 = vadd.f32 %v367, %v626
        %v628 = vpop.f32.mrb[0].mxu0
        %v629 = vadd.f32 %v367, %v628
        %630 = vmatprep.mubr.f32.mxu0 0.0
        %631 = vmatmul.mubr.f32.gmra.mrb[0].mxu0 %v399
        %v632 = vpop.f32.mrb[0].mxu0
        %v633 = vadd.f32 %v372, %v632
        %v634 = vpop.f32.mrb[0].mxu0
        %v635 = vadd.f32 %v372, %v634
        %636 = vmatprep.mubr.f32.mxu0 0.0
        %637 = vmatmul.mubr.f32.gmra.mrb[0].mxu0 %v402
        %v638 = vpop.f32.mrb[0].mxu0
        %v639 = vadd.f32 %v377, %v638
        %v640 = vpop.f32.mrb[0].mxu0
        %v641 = vadd.f32 %v377, %v640
        %642 = vdwg.mxu0
        %vm643 = vcmp.ge.f32.partialorder %v484, 0.0
        %vm644 = vcmp.ge.f32.partialorder %v486, 0.0
        %vm645 = vcmp.ge.f32.partialorder %v597, 0.0
        %vm646 = vcmp.ge.f32.partialorder %v599, 0.0
        %vm647 = vcmp.ge.f32.partialorder %v490, 0.0
        %vm648 = vcmp.ge.f32.partialorder %v492, 0.0
        %vm649 = vcmp.ge.f32.partialorder %v603, 0.0
        %vm650 = vcmp.ge.f32.partialorder %v605, 0.0
        %vm651 = vcmp.ge.f32.partialorder %v496, 0.0
        %vm652 = vcmp.ge.f32.partialorder %v498, 0.0
        %vm653 = vcmp.ge.f32.partialorder %v609, 0.0
        %vm654 = vcmp.ge.f32.partialorder %v611, 0.0
        %vm655 = vcmp.ge.f32.partialorder %v502, 0.0
        %vm656 = vcmp.ge.f32.partialorder %v504, 0.0
        %vm657 = vcmp.ge.f32.partialorder %v615, 0.0
        %vm658 = vcmp.ge.f32.partialorder %v617, 0.0
        %vm659 = vcmp.ge.f32.partialorder %v508, 0.0
        %vm660 = vcmp.ge.f32.partialorder %v510, 0.0
        %vm661 = vcmp.ge.f32.partialorder %v621, 0.0
        %vm662 = vcmp.ge.f32.partialorder %v623, 0.0
        %vm663 = vcmp.ge.f32.partialorder %v514, 0.0
        %vm664 = vcmp.ge.f32.partialorder %v516, 0.0
        %vm665 = vcmp.ge.f32.partialorder %v627, 0.0
        %vm666 = vcmp.ge.f32.partialorder %v629, 0.0
        %vm667 = vcmp.ge.f32.partialorder %v520, 0.0
        %vm668 = vcmp.ge.f32.partialorder %v522, 0.0
        %vm669 = vcmp.ge.f32.partialorder %v633, 0.0
        %vm670 = vcmp.ge.f32.partialorder %v635, 0.0
        %vm671 = vcmp.ge.f32.partialorder %v526, 0.0
        %vm672 = vcmp.ge.f32.partialorder %v528, 0.0
        %vm673 = vcmp.ge.f32.partialorder %v639, 0.0
        %vm674 = vcmp.ge.f32.partialorder %v641, 0.0
        %v675 = vmul.f32 %v484, 0.01
        %v676 = vmul.f32 %v486, 0.01
        %v677 = vmul.f32 %v597, 0.01
        %v678 = vmul.f32 %v599, 0.01
        %v679 = vmul.f32 %v490, 0.01
        %v680 = vmul.f32 %v492, 0.01
        %v681 = vmul.f32 %v603, 0.01
        %v682 = vmul.f32 %v605, 0.01
        %v683 = vmul.f32 %v496, 0.01
        %v684 = vmul.f32 %v498, 0.01
        %v685 = vmul.f32 %v609, 0.01
        %v686 = vmul.f32 %v611, 0.01
        %v687 = vmul.f32 %v502, 0.01
        %v688 = vmul.f32 %v504, 0.01
        %v689 = vmul.f32 %v615, 0.01
        %v690 = vmul.f32 %v617, 0.01
        %v691 = vmul.f32 %v508, 0.01
        %v692 = vmul.f32 %v510, 0.01
        %v693 = vmul.f32 %v621, 0.01
        %v694 = vmul.f32 %v623, 0.01
        %v695 = vmul.f32 %v514, 0.01
        %v696 = vmul.f32 %v516, 0.01
        %v697 = vmul.f32 %v627, 0.01
        %v698 = vmul.f32 %v629, 0.01
        %v699 = vmul.f32 %v520, 0.01
        %v700 = vmul.f32 %v522, 0.01
        %v701 = vmul.f32 %v633, 0.01
        %v702 = vmul.f32 %v635, 0.01
        %v703 = vmul.f32 %v526, 0.01
        %v704 = vmul.f32 %v528, 0.01
        %v705 = vmul.f32 %v639, 0.01
        %v706 = vmul.f32 %v641, 0.01
        %v707 = vsel %vm643, %v484, %v675
        %v708 = vsel %vm644, %v486, %v676
        %v709 = vsel %vm645, %v597, %v677
        %v710 = vsel %vm646, %v599, %v678
        %v711 = vsel %vm647, %v490, %v679
        %v712 = vsel %vm648, %v492, %v680
        %v713 = vsel %vm649, %v603, %v681
        %v714 = vsel %vm650, %v605, %v682
        %v715 = vsel %vm651, %v496, %v683
        %v716 = vsel %vm652, %v498, %v684
        %v717 = vsel %vm653, %v609, %v685
        %v718 = vsel %vm654, %v611, %v686
        %v719 = vsel %vm655, %v502, %v687
        %v720 = vsel %vm656, %v504, %v688
        %v721 = vsel %vm657, %v615, %v689
        %v722 = vsel %vm658, %v617, %v690
        %v723 = vsel %vm659, %v508, %v691
        %v724 = vsel %vm660, %v510, %v692
        %v725 = vsel %vm661, %v621, %v693
        %v726 = vsel %vm662, %v623, %v694
        %v727 = vsel %vm663, %v514, %v695
        %v728 = vsel %vm664, %v516, %v696
        %v729 = vsel %vm665, %v627, %v697
        %v730 = vsel %vm666, %v629, %v698
        %v731 = vsel %vm667, %v520, %v699
        %v732 = vsel %vm668, %v522, %v700
        %v733 = vsel %vm669, %v633, %v701
        %v734 = vsel %vm670, %v635, %v702
        %v735 = vsel %vm671, %v526, %v703
        %v736 = vsel %vm672, %v528, %v704
        %v737 = vsel %vm673, %v639, %v705
        %v738 = vsel %vm674, %v641, %v706
        %v739 = vld [vmem:[%s3] sm:$0xff]
        %v740 = vld [vmem:[%s3 + $0x8] sm:$0xff]
        %v741 = vld [vmem:[%s3 + $0x10] sm:$0xff]
        %v742 = vld [vmem:[%s3 + $0x18] sm:$0xff]
        %v743 = vld [vmem:[%s4] sm:$0xff]
        %v744 = vld [vmem:[%s4 + $0x8] sm:$0xff]
        %v745 = vld [vmem:[%s4 + $0x10] sm:$0xff]
        %v746 = vld [vmem:[%s4 + $0x18] sm:$0xff]
        %748 = vset.pattern.permute.xlu0 0
        %749 = vperm.xlu0 %748, %v743
        %v750 = vpop.permute.xlu0 %749
        %753 = vset.pattern.permute.xlu0 0
        %754 = vperm.xlu0 %753, %v744
        %v755 = vpop.permute.xlu0 %754
        %758 = vset.pattern.permute.xlu0 0
        %759 = vperm.xlu0 %758, %v745
        %v760 = vpop.permute.xlu0 %759
        %763 = vset.pattern.permute.xlu0 0
        %764 = vperm.xlu0 %763, %v746
        %v765 = vpop.permute.xlu0 %764
        %vm767 = vcmask 523264
        %v769 = vsel %vm767, %v739, 0
        %v772 = vsel %vm767, %v740, 0
        %v775 = vsel %vm767, %v741, 0
        %v778 = vsel %vm767, %v742, 0
        %780 = vmatprep.subr.mxu0 %v708
        %781 = vmatpush1.msra.mxu0 %v707
        %782 = vmatprep.subr.mxu0 %v712
        %783 = vmatpush1.msra.mxu0 %v711
        %784 = vmatprep.subr.mxu0 %v716
        %785 = vmatpush1.msra.mxu0 %v715
        %786 = vmatprep.subr.mxu0 %v720
        %787 = vmatpush1.msra.mxu0 %v719
        %788 = vmatprep.subr.mxu0 %v724
        %789 = vmatpush1.msra.mxu0 %v723
        %790 = vmatprep.subr.mxu0 %v728
        %791 = vmatpush1.msra.mxu0 %v727
        %792 = vmatprep.subr.mxu0 %v732
        %793 = vmatpush1.msra.mxu0 %v731
        %794 = vmatprep.subr.mxu0 %v736
        %795 = vmatpush1.msra.mxu0 %v735
        %796 = vmatprep.subr.mxu0 0.0
        %797 = vmatpush1.msra.mxu0 0.0
        %798 = vmatprep.subr.mxu0 0.0
        %799 = vmatpush1.msra.mxu0 0.0
        %800 = vmatprep.subr.mxu0 0.0
        %801 = vmatpush1.msra.mxu0 0.0
        %802 = vmatprep.subr.mxu0 0.0
        %803 = vmatpush1.msra.mxu0 0.0
        %804 = vmatprep.subr.mxu0 0.0
        %805 = vmatpush1.msra.mxu0 0.0
        %806 = vmatprep.subr.mxu0 0.0
        %807 = vmatpush1.msra.mxu0 0.0
        %808 = vmatprep.subr.mxu0 0.0
        %809 = vmatpush1.msra.mxu0 0.0
        %810 = vmatprep.subr.mxu0 0.0
        %811 = vmatpush1.msra.mxu0 0.0
        %812 = vmatprep.subr.mxu0 0.0
        %813 = vmatpush1.msra.mxu0 0.0
        %814 = vmatprep.subr.mxu0 0.0
        %815 = vmatpush1.msra.mxu0 0.0
        %816 = vmatprep.subr.mxu0 0.0
        %817 = vmatpush1.msra.mxu0 0.0
        %818 = vmatprep.subr.mxu0 0.0
        %819 = vmatpush1.msra.mxu0 0.0
        %820 = vmatprep.subr.mxu0 0.0
        %821 = vmatpush1.msra.mxu0 0.0
        %822 = vmatprep.subr.mxu0 0.0
        %823 = vmatpush1.msra.mxu0 0.0
        %824 = vmatprep.subr.mxu0 0.0
        %825 = vmatpush1.msra.mxu0 0.0
        %826 = vmatprep.subr.mxu0 0.0
        %827 = vmatpush1.msra.mxu0 0.0
        %828 = vmatprep.subr.mxu0 0.0
        %829 = vmatpush1.msra.mxu0 0.0
        %830 = vmatprep.subr.mxu0 0.0
        %831 = vmatpush1.msra.mxu0 0.0
        %832 = vmatprep.subr.mxu0 0.0
        %833 = vmatpush1.msra.mxu0 0.0
        %834 = vmatprep.subr.mxu0 0.0
        %835 = vmatpush1.msra.mxu0 0.0
        %836 = vmatprep.subr.mxu0 0.0
        %837 = vmatpush1.msra.mxu0 0.0
        %838 = vmatprep.subr.mxu0 0.0
        %839 = vmatpush1.msra.mxu0 0.0
        %840 = vmatprep.subr.mxu0 0.0
        %841 = vmatpush1.msra.mxu0 0.0
        %842 = vmatprep.subr.mxu0 0.0
        %843 = vmatpush1.msra.mxu0 0.0
        %844 = vmatprep.mubr.f32.mxu0 0.0
        %845 = vmatmul.mubr.f32.gmra.mrb[0].mxu0 %v769
        %v846 = vpop.f32.mrb[0].mxu0
        %v847 = vadd.f32 %v750, %v846
        %v848 = vpop.f32.mrb[0].mxu0
        %v849 = vadd.f32 %v750, %v848
        %850 = vmatprep.mubr.f32.mxu0 0.0
        %851 = vmatmul.mubr.f32.gmra.mrb[0].mxu0 %v772
        %v852 = vpop.f32.mrb[0].mxu0
        %v853 = vadd.f32 %v755, %v852
        %v854 = vpop.f32.mrb[0].mxu0
        %v855 = vadd.f32 %v755, %v854
        %856 = vmatprep.mubr.f32.mxu0 0.0
        %857 = vmatmul.mubr.f32.gmra.mrb[0].mxu0 %v775
        %v858 = vpop.f32.mrb[0].mxu0
        %v859 = vadd.f32 %v760, %v858
        %v860 = vpop.f32.mrb[0].mxu0
        %v861 = vadd.f32 %v760, %v860
        %862 = vmatprep.mubr.f32.mxu0 0.0
        %863 = vmatmul.mubr.f32.gmra.mrb[0].mxu0 %v778
        %v864 = vpop.f32.mrb[0].mxu0
        %v865 = vadd.f32 %v765, %v864
        %v866 = vpop.f32.mrb[0].mxu0
        %v867 = vadd.f32 %v765, %v866
        %868 = vdwg.mxu0
        %869 = vmatprep.subr.mxu0 %v710
        %870 = vmatpush1.msra.mxu0 %v709
        %871 = vmatprep.subr.mxu0 %v714
        %872 = vmatpush1.msra.mxu0 %v713
        %873 = vmatprep.subr.mxu0 %v718
        %874 = vmatpush1.msra.mxu0 %v717
        %875 = vmatprep.subr.mxu0 %v722
        %876 = vmatpush1.msra.mxu0 %v721
        %877 = vmatprep.subr.mxu0 %v726
        %878 = vmatpush1.msra.mxu0 %v725
        %879 = vmatprep.subr.mxu0 %v730
        %880 = vmatpush1.msra.mxu0 %v729
        %881 = vmatprep.subr.mxu0 %v734
        %882 = vmatpush1.msra.mxu0 %v733
        %883 = vmatprep.subr.mxu0 %v738
        %884 = vmatpush1.msra.mxu0 %v737
        %885 = vmatprep.subr.mxu0 0.0
        %886 = vmatpush1.msra.mxu0 0.0
        %887 = vmatprep.subr.mxu0 0.0
        %888 = vmatpush1.msra.mxu0 0.0
        %889 = vmatprep.subr.mxu0 0.0
        %890 = vmatpush1.msra.mxu0 0.0
        %891 = vmatprep.subr.mxu0 0.0
        %892 = vmatpush1.msra.mxu0 0.0
        %893 = vmatprep.subr.mxu0 0.0
        %894 = vmatpush1.msra.mxu0 0.0
        %895 = vmatprep.subr.mxu0 0.0
        %896 = vmatpush1.msra.mxu0 0.0
        %897 = vmatprep.subr.mxu0 0.0
        %898 = vmatpush1.msra.mxu0 0.0
        %899 = vmatprep.subr.mxu0 0.0
        %900 = vmatpush1.msra.mxu0 0.0
        %901 = vmatprep.subr.mxu0 0.0
        %902 = vmatpush1.msra.mxu0 0.0
        %903 = vmatprep.subr.mxu0 0.0
        %904 = vmatpush1.msra.mxu0 0.0
        %905 = vmatprep.subr.mxu0 0.0
        %906 = vmatpush1.msra.mxu0 0.0
        %907 = vmatprep.subr.mxu0 0.0
        %908 = vmatpush1.msra.mxu0 0.0
        %909 = vmatprep.subr.mxu0 0.0
        %910 = vmatpush1.msra.mxu0 0.0
        %911 = vmatprep.subr.mxu0 0.0
        %912 = vmatpush1.msra.mxu0 0.0
        %913 = vmatprep.subr.mxu0 0.0
        %914 = vmatpush1.msra.mxu0 0.0
        %915 = vmatprep.subr.mxu0 0.0
        %916 = vmatpush1.msra.mxu0 0.0
        %917 = vmatprep.subr.mxu0 0.0
        %918 = vmatpush1.msra.mxu0 0.0
        %919 = vmatprep.subr.mxu0 0.0
        %920 = vmatpush1.msra.mxu0 0.0
        %921 = vmatprep.subr.mxu0 0.0
        %922 = vmatpush1.msra.mxu0 0.0
        %923 = vmatprep.subr.mxu0 0.0
        %924 = vmatpush1.msra.mxu0 0.0
        %925 = vmatprep.subr.mxu0 0.0
        %926 = vmatpush1.msra.mxu0 0.0
        %927 = vmatprep.subr.mxu0 0.0
        %928 = vmatpush1.msra.mxu0 0.0
        %929 = vmatprep.subr.mxu0 0.0
        %930 = vmatpush1.msra.mxu0 0.0
        %931 = vmatprep.subr.mxu0 0.0
        %932 = vmatpush1.msra.mxu0 0.0
        %933 = vmatprep.mubr.f32.mxu0 0.0
        %934 = vmatmul.mubr.f32.gmra.mrb[0].mxu0 %v769
        %v935 = vpop.f32.mrb[0].mxu0
        %v936 = vadd.f32 %v750, %v935
        %v937 = vpop.f32.mrb[0].mxu0
        %v938 = vadd.f32 %v750, %v937
        %939 = vmatprep.mubr.f32.mxu0 0.0
        %940 = vmatmul.mubr.f32.gmra.mrb[0].mxu0 %v772
        %v941 = vpop.f32.mrb[0].mxu0
        %v942 = vadd.f32 %v755, %v941
        %v943 = vpop.f32.mrb[0].mxu0
        %v944 = vadd.f32 %v755, %v943
        %945 = vmatprep.mubr.f32.mxu0 0.0
        %946 = vmatmul.mubr.f32.gmra.mrb[0].mxu0 %v775
        %v947 = vpop.f32.mrb[0].mxu0
        %v948 = vadd.f32 %v760, %v947
        %v949 = vpop.f32.mrb[0].mxu0
        %v950 = vadd.f32 %v760, %v949
        %951 = vmatprep.mubr.f32.mxu0 0.0
        %952 = vmatmul.mubr.f32.gmra.mrb[0].mxu0 %v778
        %v953 = vpop.f32.mrb[0].mxu0
        %v954 = vadd.f32 %v765, %v953
        %v955 = vpop.f32.mrb[0].mxu0
        %v956 = vadd.f32 %v765, %v955
        %957 = vdwg.mxu0
        %vm958 = vcmp.ge.f32.partialorder %v847, 0.0
        %vm959 = vcmp.ge.f32.partialorder %v849, 0.0
        %vm960 = vcmp.ge.f32.partialorder %v936, 0.0
        %vm961 = vcmp.ge.f32.partialorder %v938, 0.0
        %vm962 = vcmp.ge.f32.partialorder %v853, 0.0
        %vm963 = vcmp.ge.f32.partialorder %v855, 0.0
        %vm964 = vcmp.ge.f32.partialorder %v942, 0.0
        %vm965 = vcmp.ge.f32.partialorder %v944, 0.0
        %vm966 = vcmp.ge.f32.partialorder %v859, 0.0
        %vm967 = vcmp.ge.f32.partialorder %v861, 0.0
        %vm968 = vcmp.ge.f32.partialorder %v948, 0.0
        %vm969 = vcmp.ge.f32.partialorder %v950, 0.0
        %vm970 = vcmp.ge.f32.partialorder %v865, 0.0
        %vm971 = vcmp.ge.f32.partialorder %v867, 0.0
        %vm972 = vcmp.ge.f32.partialorder %v954, 0.0
        %vm973 = vcmp.ge.f32.partialorder %v956, 0.0
        %v974 = vmul.f32 %v847, 0.01
        %v975 = vmul.f32 %v849, 0.01
        %v976 = vmul.f32 %v936, 0.01
        %v977 = vmul.f32 %v938, 0.01
        %v978 = vmul.f32 %v853, 0.01
        %v979 = vmul.f32 %v855, 0.01
        %v980 = vmul.f32 %v942, 0.01
        %v981 = vmul.f32 %v944, 0.01
        %v982 = vmul.f32 %v859, 0.01
        %v983 = vmul.f32 %v861, 0.01
        %v984 = vmul.f32 %v948, 0.01
        %v985 = vmul.f32 %v950, 0.01
        %v986 = vmul.f32 %v865, 0.01
        %v987 = vmul.f32 %v867, 0.01
        %v988 = vmul.f32 %v954, 0.01
        %v989 = vmul.f32 %v956, 0.01
        %v990 = vsel %vm958, %v847, %v974
        %v991 = vsel %vm959, %v849, %v975
        %v992 = vsel %vm960, %v936, %v976
        %v993 = vsel %vm961, %v938, %v977
        %v994 = vsel %vm962, %v853, %v978
        %v995 = vsel %vm963, %v855, %v979
        %v996 = vsel %vm964, %v942, %v980
        %v997 = vsel %vm965, %v944, %v981
        %v998 = vsel %vm966, %v859, %v982
        %v999 = vsel %vm967, %v861, %v983
        %v1000 = vsel %vm968, %v948, %v984
        %v1001 = vsel %vm969, %v950, %v985
        %v1002 = vsel %vm970, %v865, %v986
        %v1003 = vsel %vm971, %v867, %v987
        %v1004 = vsel %vm972, %v954, %v988
        %v1005 = vsel %vm973, %v956, %v989
        %v1006 = vld [vmem:[%s5] sm:$0x1]
        %v1007 = vld [vmem:[#allocation2] sm:$0x1]
        %1009 = vset.pattern.permute.xlu0 0
        %1010 = vperm.xlu0 %1009, %v1007
        %v1011 = vpop.permute.xlu0 %1010
        %v1013 = vlaneseq
        %v1014 = vshrl.u32 %v1013, 7
        %v1015 = vsub.s32 0, %v1014
        %v1016 = vrot.slane %v1011, %v1015
        %vm1017 = vcmask 261120
        %v1019 = vsel %vm1017, %v1006, 0
        %1021 = vmatprep.subr.mxu0 %v991
        %1022 = vmatpush1.msra.mxu0 %v990
        %1023 = vmatprep.subr.mxu0 %v995
        %1024 = vmatpush1.msra.mxu0 %v994
        %1025 = vmatprep.subr.mxu0 %v999
        %1026 = vmatpush1.msra.mxu0 %v998
        %1027 = vmatprep.subr.mxu0 %v1003
        %1028 = vmatpush1.msra.mxu0 %v1002
        %1029 = vmatprep.subr.mxu0 0.0
        %1030 = vmatpush1.msra.mxu0 0.0
        %1031 = vmatprep.subr.mxu0 0.0
        %1032 = vmatpush1.msra.mxu0 0.0
        %1033 = vmatprep.subr.mxu0 0.0
        %1034 = vmatpush1.msra.mxu0 0.0
        %1035 = vmatprep.subr.mxu0 0.0
        %1036 = vmatpush1.msra.mxu0 0.0
        %1037 = vmatprep.subr.mxu0 0.0
        %1038 = vmatpush1.msra.mxu0 0.0
        %1039 = vmatprep.subr.mxu0 0.0
        %1040 = vmatpush1.msra.mxu0 0.0
        %1041 = vmatprep.subr.mxu0 0.0
        %1042 = vmatpush1.msra.mxu0 0.0
        %1043 = vmatprep.subr.mxu0 0.0
        %1044 = vmatpush1.msra.mxu0 0.0
        %1045 = vmatprep.subr.mxu0 0.0
        %1046 = vmatpush1.msra.mxu0 0.0
        %1047 = vmatprep.subr.mxu0 0.0
        %1048 = vmatpush1.msra.mxu0 0.0
        %1049 = vmatprep.subr.mxu0 0.0
        %1050 = vmatpush1.msra.mxu0 0.0
        %1051 = vmatprep.subr.mxu0 0.0
        %1052 = vmatpush1.msra.mxu0 0.0
        %1053 = vmatprep.subr.mxu0 0.0
        %1054 = vmatpush1.msra.mxu0 0.0
        %1055 = vmatprep.subr.mxu0 0.0
        %1056 = vmatpush1.msra.mxu0 0.0
        %1057 = vmatprep.subr.mxu0 0.0
        %1058 = vmatpush1.msra.mxu0 0.0
        %1059 = vmatprep.subr.mxu0 0.0
        %1060 = vmatpush1.msra.mxu0 0.0
        %1061 = vmatprep.subr.mxu0 0.0
        %1062 = vmatpush1.msra.mxu0 0.0
        %1063 = vmatprep.subr.mxu0 0.0
        %1064 = vmatpush1.msra.mxu0 0.0
        %1065 = vmatprep.subr.mxu0 0.0
        %1066 = vmatpush1.msra.mxu0 0.0
        %1067 = vmatprep.subr.mxu0 0.0
        %1068 = vmatpush1.msra.mxu0 0.0
        %1069 = vmatprep.subr.mxu0 0.0
        %1070 = vmatpush1.msra.mxu0 0.0
        %1071 = vmatprep.subr.mxu0 0.0
        %1072 = vmatpush1.msra.mxu0 0.0
        %1073 = vmatprep.subr.mxu0 0.0
        %1074 = vmatpush1.msra.mxu0 0.0
        %1075 = vmatprep.subr.mxu0 0.0
        %1076 = vmatpush1.msra.mxu0 0.0
        %1077 = vmatprep.subr.mxu0 0.0
        %1078 = vmatpush1.msra.mxu0 0.0
        %1079 = vmatprep.subr.mxu0 0.0
        %1080 = vmatpush1.msra.mxu0 0.0
        %1081 = vmatprep.subr.mxu0 0.0
        %1082 = vmatpush1.msra.mxu0 0.0
        %1083 = vmatprep.subr.mxu0 0.0
        %1084 = vmatpush1.msra.mxu0 0.0
        %1085 = vmatprep.mubr.f32.mxu0 0.0
        %1086 = vmatmul.mubr.f32.gmra.mrb[0].mxu0 %v1019
        %v1087 = vpop.f32.mrb[0].mxu0
        %v1088 = vadd.f32 %v1016, %v1087
        %v1089 = vpop.f32.mrb[0].mxu0
        %v1090 = vadd.f32 %v1016, %v1089
        %1091 = vdwg.mxu0
        %1092 = vmatprep.subr.mxu0 %v993
        %1093 = vmatpush1.msra.mxu0 %v992
        %1094 = vmatprep.subr.mxu0 %v997
        %1095 = vmatpush1.msra.mxu0 %v996
        %1096 = vmatprep.subr.mxu0 %v1001
        %1097 = vmatpush1.msra.mxu0 %v1000
        %1098 = vmatprep.subr.mxu0 %v1005
        %1099 = vmatpush1.msra.mxu0 %v1004
        %1100 = vmatprep.subr.mxu0 0.0
        %1101 = vmatpush1.msra.mxu0 0.0
        %1102 = vmatprep.subr.mxu0 0.0
        %1103 = vmatpush1.msra.mxu0 0.0
        %1104 = vmatprep.subr.mxu0 0.0
        %1105 = vmatpush1.msra.mxu0 0.0
        %1106 = vmatprep.subr.mxu0 0.0
        %1107 = vmatpush1.msra.mxu0 0.0
        %1108 = vmatprep.subr.mxu0 0.0
        %1109 = vmatpush1.msra.mxu0 0.0
        %1110 = vmatprep.subr.mxu0 0.0
        %1111 = vmatpush1.msra.mxu0 0.0
        %1112 = vmatprep.subr.mxu0 0.0
        %1113 = vmatpush1.msra.mxu0 0.0
        %1114 = vmatprep.subr.mxu0 0.0
        %1115 = vmatpush1.msra.mxu0 0.0
        %1116 = vmatprep.subr.mxu0 0.0
        %1117 = vmatpush1.msra.mxu0 0.0
        %1118 = vmatprep.subr.mxu0 0.0
        %1119 = vmatpush1.msra.mxu0 0.0
        %1120 = vmatprep.subr.mxu0 0.0
        %1121 = vmatpush1.msra.mxu0 0.0
        %1122 = vmatprep.subr.mxu0 0.0
        %1123 = vmatpush1.msra.mxu0 0.0
        %1124 = vmatprep.subr.mxu0 0.0
        %1125 = vmatpush1.msra.mxu0 0.0
        %1126 = vmatprep.subr.mxu0 0.0
        %1127 = vmatpush1.msra.mxu0 0.0
        %1128 = vmatprep.subr.mxu0 0.0
        %1129 = vmatpush1.msra.mxu0 0.0
        %1130 = vmatprep.subr.mxu0 0.0
        %1131 = vmatpush1.msra.mxu0 0.0
        %1132 = vmatprep.subr.mxu0 0.0
        %1133 = vmatpush1.msra.mxu0 0.0
        %1134 = vmatprep.subr.mxu0 0.0
        %1135 = vmatpush1.msra.mxu0 0.0
        %1136 = vmatprep.subr.mxu0 0.0
        %1137 = vmatpush1.msra.mxu0 0.0
        %1138 = vmatprep.subr.mxu0 0.0
        %1139 = vmatpush1.msra.mxu0 0.0
        %1140 = vmatprep.subr.mxu0 0.0
        %1141 = vmatpush1.msra.mxu0 0.0
        %1142 = vmatprep.subr.mxu0 0.0
        %1143 = vmatpush1.msra.mxu0 0.0
        %1144 = vmatprep.subr.mxu0 0.0
        %1145 = vmatpush1.msra.mxu0 0.0
        %1146 = vmatprep.subr.mxu0 0.0
        %1147 = vmatpush1.msra.mxu0 0.0
        %1148 = vmatprep.subr.mxu0 0.0
        %1149 = vmatpush1.msra.mxu0 0.0
        %1150 = vmatprep.subr.mxu0 0.0
        %1151 = vmatpush1.msra.mxu0 0.0
        %1152 = vmatprep.subr.mxu0 0.0
        %1153 = vmatpush1.msra.mxu0 0.0
        %1154 = vmatprep.subr.mxu0 0.0
        %1155 = vmatpush1.msra.mxu0 0.0
        %1156 = vmatprep.mubr.f32.mxu0 0.0
        %1157 = vmatmul.mubr.f32.gmra.mrb[0].mxu0 %v1019
        %v1158 = vpop.f32.mrb[0].mxu0
        %v1159 = vadd.f32 %v1016, %v1158
        %v1160 = vpop.f32.mrb[0].mxu0
        %v1161 = vadd.f32 %v1016, %v1160
        %1162 = vdwg.mxu0
        %v1163 = vsub.f32 0.0, %v1088
        %v1164 = vsub.f32 0.0, %v1090
        %v1165 = vsub.f32 0.0, %v1159
        %v1166 = vsub.f32 0.0, %v1161
        %v1167 = vmul.f32 %v1163, 1.442695
        %v1168 = vpow.pop %v1167
        %v1169 = vmul.f32 %v1164, 1.442695
        %v1170 = vpow.pop %v1169
        %v1171 = vmul.f32 %v1165, 1.442695
        %v1172 = vpow.pop %v1171
        %v1173 = vmul.f32 %v1166, 1.442695
        %v1174 = vpow.pop %v1173
        %v1175 = vadd.f32 %v1168, 1.0
        %v1176 = vadd.f32 %v1170, 1.0
        %v1177 = vadd.f32 %v1172, 1.0
        %v1178 = vadd.f32 %v1174, 1.0
        %v1179 = vrcp.pop %v1175
        %v1180 = vrcp.pop %v1176
        %v1181 = vrcp.pop %v1177
        %v1182 = vrcp.pop %v1178
        %v1183 = vsub.f32 1.0, %v1179
        %v1184 = vsub.f32 1.0, %v1180
        %v1185 = vsub.f32 1.0, %v1181
        %v1186 = vsub.f32 1.0, %v1182
        %v1191 = vcombine.low %v1183, %v1184
        %v1192 = vcombine.low %v1185, %v1186
        %v1194 = vunpack.c.l.s4 1966171168
        %v1195 = vunpack.c.0.s8 %v1194
        %v1196 = vlaneseq
        %v1197 = vshrl.u32 %v1196, 7
        %v1198 = vsub.s32 %v1195, %v1197
        %v1199 = vrot.slane %v1191, %v1198
        %v1201 = vunpack.c.l.s4 1966171168
        %v1202 = vunpack.c.0.s8 %v1201
        %v1203 = vlaneseq
        %v1204 = vshrl.u32 %v1203, 7
        %v1205 = vsub.s32 %v1202, %v1204
        %v1206 = vrot.slane %v1192, %v1205
        %v1207 = vcombine.low %v1199, %v1206
        %v1209 = vunpack.c.l.s4 1966171168
        %v1210 = vunpack.c.0.s8 %v1209
        %v1211 = vlaneseq
        %v1212 = vshrl.u32 %v1211, 7
        %v1213 = vsub.s32 %v1210, %v1212
        %v1214 = vrot.slane %v1207, %v1213
        %v1216 = vlaneseq
        %vm1217 = vcmp.ge.s32.totalorder %v1216, 0
        %vm1218 = vcmp.lt.s32.totalorder %v1216, 512
        %vm1219 = vmand %vm1217, %vm1218
        %1220 = vst.msk [vmem:[%s312] ss:$2 sm:$0xf] %vm1219, %v1214
        %v1225 = vcombine.low %v1179, %v1180
        %v1226 = vcombine.low %v1181, %v1182
        %v1228 = vunpack.c.l.s4 1966171168
        %v1229 = vunpack.c.0.s8 %v1228
        %v1230 = vlaneseq
        %v1231 = vshrl.u32 %v1230, 7
        %v1232 = vsub.s32 %v1229, %v1231
        %v1233 = vrot.slane %v1225, %v1232
        %v1235 = vunpack.c.l.s4 1966171168
        %v1236 = vunpack.c.0.s8 %v1235
        %v1237 = vlaneseq
        %v1238 = vshrl.u32 %v1237, 7
        %v1239 = vsub.s32 %v1236, %v1238
        %v1240 = vrot.slane %v1226, %v1239
        %v1241 = vcombine.low %v1233, %v1240
        %v1243 = vunpack.c.l.s4 1966171168
        %v1244 = vunpack.c.0.s8 %v1243
        %v1245 = vlaneseq
        %v1246 = vshrl.u32 %v1245, 7
        %v1247 = vsub.s32 %v1244, %v1246
        %v1248 = vrot.slane %v1241, %v1247
        %s1250 = scalar_lea.vmem %s312, 1 [#allocation4]
        %1251 = vst.msk [vmem:[%s1250] ss:$2 sm:$0xf] %vm1219, %v1248
        %s1252 = sand.u32 %s183, 1
        %s1253 = scalar_lea.sflag [#allocation5], %s1252
        %s1254 = sand.u32 %s183, 1
        %s1255 = smul.addr %s1254, 8
        %s1256 = scalar_lea.vmem [#allocation4], %s1255
        // Predicated region
        $region72: #{actor_forward.1} parent=66 // pred_check
          %p1257 = pneg %p193
        $region73: #{actor_forward.1} parent=66 // pred_check_branch
          %1259 = sbr.rel (%p1257) target = $region75
        $region74: #{actor_forward.1} parent=66 // pred_region
          %s1260 = smul.u32 4, %s23
          %s1262 = ssub.s32 128, 128
          %1263 = vsyncadd %s1253, %s1262
          %s1264 = smul.addr %s1260, 32
          %s1265 = scalar_lea.hbm %s7, %s1264
          %s1267 = sshll.u32 %s1256, 4
          %s1268 = int_to_ptr.vmem [resolvable:$true] %s1267
          %1270 = dma.vmem_to_hbm [thread:$0]  %s1268, 128, %s1265, %s1253
        $region75: #{actor_forward.1} parent=66 // pred_fallthru
          _
      $region67: #{actor_forward.1} parent=5 // pred_fallthru
        _
      %p1271 = scmp.le.s32.totalorder 2, %s18
      // Predicated region
      $region76: #{actor_forward.1} parent=5 // pred_check
        %p1272 = pneg %p1271
      $region77: #{actor_forward.1} parent=5 // pred_check_branch
        %1274 = sbr.rel (%p1272) target = $region79
      $region78: #{actor_forward.1} parent=5 // pred_region
        %s1275 = ssub.s32 %s18, 2
        // Predicated region
        $region80: #{actor_forward.1} parent=78 // pred_check
          %p1276 = pneg %p199
        $region81: #{actor_forward.1} parent=78 // pred_check_branch
          %1278 = sbr.rel (%p1276) target = $region83
        $region82: #{actor_forward.1} parent=78 // pred_region
          %s1279 = sand.u32 %s184, 1
          %s1280 = scalar_lea.sflag [#allocation5], %s1279
          %s1281 = sand.u32 %s184, 1
          %s1282 = smul.addr %s1281, 8
          %s1283 = scalar_lea.vmem [#allocation4], %s1282
          %1284 = dma.done %s1280, 128
        $region83: #{actor_forward.1} parent=78 // pred_fallthru
          _
      $region79: #{actor_forward.1} parent=5 // pred_fallthru
        _
    $region6: #{actor_forward.1} parent=1 // loop_footer
      %s22 = sadd.s32 1, %s18
    $region7: #{actor_forward.1} parent=1 // loop_footer_branch
      %17 = sbr.rel target = $region3
    $region8: #{actor_forward.1} parent=1 // loop_exit
      _
    %1285 = vsyncpa [#allocation5], 1
    %s1286 = scalar_lea.sflag [#allocation5], 1
    %1287 = vsyncpa %s1286, 1

</llo_original>
